<compile_context>
chip_gen: v7x
topology: tpu7x:2x2x1
jax: 0.10.0
libtpu: 0.0.40
codegen_flags: <defaults>
</compile_context>

<pallas_src>
import functools

import jax
import jax.numpy as jnp
from jax.experimental import pallas as pl
from jax.experimental.pallas import tpu as pltpu


def _round_up(n, m):
    return ((n + m - 1) // m) * m


def two_layer_kernel(x_ref, w1_ref, b_ref, w2_ref, o_ref):
    # fc1 + relu: bf16 x bf16 on the MXU, f32 accumulation; bias/activations in f32.
    x = x_ref[...].astype(jnp.bfloat16)                       # (B, 784) bf16 (in-vreg cast)
    b = b_ref[...]                                            # (2, 128) f32
    h1 = jnp.dot(x, w1_ref[...], preferred_element_type=jnp.float32) + b[0:1, :]
    a1 = jnp.maximum(h1, 0.0)
    # sigmoid (exp on the EUP, f32)
    z1 = 1.0 / (1.0 + jnp.exp(-a1))                           # (B, 128) f32
    # fc2 + relu
    h2 = jnp.dot(z1.astype(jnp.bfloat16), w2_ref[...],
                 preferred_element_type=jnp.float32) + b[1:2, :]
    a2 = jnp.maximum(h2, 0.0)
    # softmax over dim=0 (batch axis), as in the PyTorch module; padded columns are
    # normalized independently and sliced off in the wrapper.
    m = jnp.max(a2, axis=0, keepdims=True)
    e = jnp.exp(a2 - m)
    o_ref[...] = e / jnp.sum(e, axis=0, keepdims=True)


def pack_params(w1, b1, w2, b2):
    """One-time parameter repack (NOT on the per-call path).

    w1: (IN, HID), b1: (1, HID), w2: (HID, OUT), b2: (1, OUT)  — all f32,
    weights already transposed to (in, out) vs. PyTorch's (out, in).
    Returns (w1_p bf16 (IN,128), b_p f32 (2,128), w2_p bf16 (128,128)).
    """
    IN, HID = w1.shape
    OUT = w2.shape[1]
    HID_P = _round_up(HID, 128)
    OUT_P = _round_up(OUT, 128)
    assert HID_P == OUT_P, "bias packing below assumes a common 128-lane pad"

    w1_p = jnp.pad(w1, ((0, 0), (0, HID_P - HID))).astype(jnp.bfloat16)
    w2_p = jnp.pad(w2, ((0, HID_P - HID), (0, OUT_P - OUT))).astype(jnp.bfloat16)
    b_p = jnp.concatenate(
        [jnp.pad(b1.reshape(1, -1), ((0, 0), (0, HID_P - HID))),
         jnp.pad(b2.reshape(1, -1), ((0, 0), (0, OUT_P - OUT)))], axis=0)
    return w1_p, b_p, w2_p


@functools.partial(jax.jit, static_argnames=("out_dim",))
def two_layer_net(x, w1_p, b_p, w2_p, *, out_dim):
    """Forward pass. x: (B, IN) f32; packed params from pack_params."""
    B, IN = x.shape
    HID_P = w1_p.shape[1]
    OUT_P = w2_p.shape[1]

    full = lambda shape: pl.BlockSpec(shape, lambda: (0,) * len(shape))

    flops = 2 * B * IN * HID_P + 2 * B * HID_P * OUT_P
    transcendentals = B * HID_P + B * OUT_P                    # sigmoid exp + softmax exp
    bytes_accessed = (x.size * 4 + w1_p.size * 2 + b_p.size * 4
                      + w2_p.size * 2 + B * OUT_P * 4)

    out_p = pl.pallas_call(
        two_layer_kernel,
        out_shape=jax.ShapeDtypeStruct((B, OUT_P), jnp.float32),
        in_specs=[full(x.shape), full(w1_p.shape), full(b_p.shape), full(w2_p.shape)],
        out_specs=full((B, OUT_P)),
        cost_estimate=pl.CostEstimate(
            flops=flops,
            transcendentals=transcendentals,
            bytes_accessed=bytes_accessed,
        ),
    )(x, w1_p, b_p, w2_p)

    return out_p[:, :out_dim]


def reference_f32(x, w1, b1, w2, b2):
    """Pure-f32 reference mirroring the PyTorch module exactly."""
    a1 = jnp.maximum(x @ w1 + b1, 0.0)
    z1 = jax.nn.sigmoid(a1)
    a2 = jnp.maximum(z1 @ w2 + b2, 0.0)
    return jax.nn.softmax(a2, axis=0)


def reference_quantized(x, w1, b1, w2, b2):
    """Pure-JAX reference with the SAME bf16 quantization points as the kernel."""
    a1 = jnp.maximum(
        jnp.dot(x.astype(jnp.bfloat16), w1.astype(jnp.bfloat16),
                preferred_element_type=jnp.float32) + b1, 0.0)
    z1 = 1.0 / (1.0 + jnp.exp(-a1))
    a2 = jnp.maximum(
        jnp.dot(z1.astype(jnp.bfloat16), w2.astype(jnp.bfloat16),
                preferred_element_type=jnp.float32) + b2, 0.0)
    m = jnp.max(a2, axis=0, keepdims=True)
    e = jnp.exp(a2 - m)
    return e / jnp.sum(e, axis=0, keepdims=True)


if __name__ == "__main__":
    key = jax.random.PRNGKey(0)
    kx, k1, k2, k3, k4 = jax.random.split(key, 5)

    B, IN, HID, OUT = 8, 784, 50, 10

    x = jax.random.normal(kx, (B, IN), dtype=jnp.float32)

    # Deterministic init mimicking nn.Linear's uniform(-1/sqrt(fan_in), 1/sqrt(fan_in)).
    bound1 = 1.0 / float(IN) ** 0.5
    w1 = jax.random.uniform(k1, (IN, HID), jnp.float32, -bound1, bound1)
    b1 = jax.random.uniform(k2, (1, HID), jnp.float32, -bound1, bound1)
    bound2 = 1.0 / float(HID) ** 0.5
    w2 = jax.random.uniform(k3, (HID, OUT), jnp.float32, -bound2, bound2)
    b2 = jax.random.uniform(k4, (1, OUT), jnp.float32, -bound2, bound2)

    # One-time packing (off the per-call forward path).
    w1_p, b_p, w2_p = jax.block_until_ready(pack_params(w1, b1, w2, b2))

    y = two_layer_net(x, w1_p, b_p, w2_p, out_dim=OUT)
    y = jax.block_until_ready(y)
    assert y.shape == (B, OUT)

    # Strict check vs. a pure-JAX reference with identical bf16 quantization points.
    y_q = reference_quantized(x, w1, b1, w2, b2)
    assert jnp.allclose(y, y_q, atol=1e-5, rtol=1e-5), "mismatch vs bf16-quantized reference"

    # Semantics check vs. the full-f32 PyTorch-equivalent module (within bf16 noise).
    y_f32 = reference_f32(x, w1, b1, w2, b2)
    assert jnp.allclose(y, y_f32, atol=2e-2, rtol=2e-2), "mismatch vs f32 reference"

    print("KERNEL_OK")
</pallas_src>

<mosaic_0001>
module attributes {stable_mosaic.version = 11 : i64} {
  func.func @two_layer_kernel(%arg0: memref<8x784xf32, #tpu.memory_space<vmem>>, %arg1: memref<784x128xbf16, #tpu.memory_space<vmem>>, %arg2: memref<2x128xf32, #tpu.memory_space<vmem>>, %arg3: memref<128x128xbf16, #tpu.memory_space<vmem>>, %arg4: memref<8x128xf32, #tpu.memory_space<vmem>>) attributes {dimension_semantics = [], scalar_prefetch = 0 : i64, scratch_operands = 0 : i64, tpu.core_type = #tpu.core_type<tc>} {
    %c0 = arith.constant 0 : index
    %c0_0 = arith.constant 0 : index
    %0 = vector.load %arg0[%c0, %c0_0] : memref<8x784xf32, #tpu.memory_space<vmem>>, vector<8x784xf32>
    %1 = arith.truncf %0 : vector<8x784xf32> to vector<8x784xbf16>
    %c0_1 = arith.constant 0 : index
    %c0_2 = arith.constant 0 : index
    %2 = vector.load %arg2[%c0_1, %c0_2] : memref<2x128xf32, #tpu.memory_space<vmem>>, vector<2x128xf32>
    %c0_3 = arith.constant 0 : index
    %c0_4 = arith.constant 0 : index
    %3 = vector.load %arg1[%c0_3, %c0_4] : memref<784x128xbf16, #tpu.memory_space<vmem>>, vector<784x128xbf16>
    %cst = arith.constant dense<0.000000e+00> : vector<8x128xf32>
    %4 = tpu.matmul %1, %3, %cst {dimension_numbers = #tpu.dot_dimension_numbers<[1], [0], [0], [1], [0, 0, 1, 1], [], []>} : vector<8x784xbf16>, vector<784x128xbf16>, vector<8x128xf32> -> vector<8x128xf32>
    %5 = vector.extract_strided_slice %2 {offsets = [0, 0], sizes = [1, 128], strides = [1, 1]} : vector<2x128xf32> to vector<1x128xf32>
    %6 = vector.broadcast %5 : vector<1x128xf32> to vector<8x128xf32>
    %7 = arith.addf %4, %6 : vector<8x128xf32>
    %cst_5 = arith.constant 0.000000e+00 : f32
    %8 = vector.broadcast %cst_5 : f32 to vector<8x128xf32>
    %9 = arith.maximumf %7, %8 : vector<8x128xf32>
    %cst_6 = arith.constant 0.000000e+00 : f32
    %10 = vector.broadcast %cst_6 : f32 to vector<8x128xf32>
    %11 = arith.subf %10, %9 : vector<8x128xf32>
    %12 = math.exp %11 : vector<8x128xf32>
    %cst_7 = arith.constant 1.000000e+00 : f32
    %13 = vector.broadcast %cst_7 : f32 to vector<8x128xf32>
    %14 = arith.addf %13, %12 : vector<8x128xf32>
    %cst_8 = arith.constant 1.000000e+00 : f32
    %15 = vector.broadcast %cst_8 : f32 to vector<8x128xf32>
    %16 = arith.divf %15, %14 : vector<8x128xf32>
    %17 = arith.truncf %16 : vector<8x128xf32> to vector<8x128xbf16>
    %c0_9 = arith.constant 0 : index
    %c0_10 = arith.constant 0 : index
    %18 = vector.load %arg3[%c0_9, %c0_10] : memref<128x128xbf16, #tpu.memory_space<vmem>>, vector<128x128xbf16>
    %cst_11 = arith.constant dense<0.000000e+00> : vector<8x128xf32>
    %19 = tpu.matmul %17, %18, %cst_11 {dimension_numbers = #tpu.dot_dimension_numbers<[1], [0], [0], [1], [0, 0, 1, 1], [], []>} : vector<8x128xbf16>, vector<128x128xbf16>, vector<8x128xf32> -> vector<8x128xf32>
    %20 = vector.extract_strided_slice %2 {offsets = [1, 0], sizes = [1, 128], strides = [1, 1]} : vector<2x128xf32> to vector<1x128xf32>
    %21 = vector.broadcast %20 : vector<1x128xf32> to vector<8x128xf32>
    %22 = arith.addf %19, %21 : vector<8x128xf32>
    %cst_12 = arith.constant 0.000000e+00 : f32
    %23 = vector.broadcast %cst_12 : f32 to vector<8x128xf32>
    %24 = arith.maximumf %22, %23 : vector<8x128xf32>
    %cst_13 = arith.constant dense<0xFF800000> : vector<128xf32>
    %25 = vector.multi_reduction <maximumf>, %24, %cst_13 [0] : vector<8x128xf32> to vector<128xf32>
    %26 = vector.shape_cast %25 : vector<128xf32> to vector<1x128xf32>
    %27 = vector.broadcast %26 : vector<1x128xf32> to vector<8x128xf32>
    %28 = arith.subf %24, %27 : vector<8x128xf32>
    %29 = math.exp %28 : vector<8x128xf32>
    %cst_14 = arith.constant dense<0.000000e+00> : vector<128xf32>
    %30 = vector.multi_reduction <add>, %29, %cst_14 [0] : vector<8x128xf32> to vector<128xf32>
    %31 = vector.shape_cast %30 : vector<128xf32> to vector<1x128xf32>
    %32 = vector.broadcast %31 : vector<1x128xf32> to vector<8x128xf32>
    %33 = arith.divf %29, %32 : vector<8x128xf32>
    %c0_15 = arith.constant 0 : index
    %c0_16 = arith.constant 0 : index
    %34 = vector.load %arg4[%c0_15, %c0_16] : memref<8x128xf32, #tpu.memory_space<vmem>>, vector<8x128xf32>
    tpu.vector_store %arg4[%c0_15, %c0_16], %33 {strides = array<i32>} : memref<8x128xf32, #tpu.memory_space<vmem>>, vector<8x128xf32>,
    return
  }
}

</mosaic_0001>

<llo_original>
// kernel: two_layer_net.1
$region0: #{two_layer_net.1}
  #allocation0 [shape = 'u32[]', space=smem, size = 0x4, offset = 0x4, fixed_abs, tag = 'smem constant byte address 0x4 - core index']
  #allocation1 [shape = 'u32[144,128]{1,0:T(1,128)}', space=vmem, size = 0x12000, scoped, tag = 'internal scratch']
  %s0 = inlined_call_operand.hbm [shape: f32[8,784], index: 0, kind: input, shape index: {}]
  %s1 = inlined_call_operand.hbm [shape: bf16[784,128], index: 1, kind: input, shape index: {}]
  %s2 = inlined_call_operand.vmem [shape: f32[2,128], index: 2, kind: input, shape index: {}]
  %s3 = inlined_call_operand.hbm [shape: bf16[128,128], index: 3, kind: input, shape index: {}]
  %s4 = inlined_call_operand.hbm [shape: f32[8,128], index: 4, kind: output, shape index: {}]
  %s5 = sld [smem:[#allocation0]]
  $region38: #{two_layer_net.1} parent=0
    _
  %s7 = ssub.s32 1, %s5
  %s8 = scalar_select 0, %s7, %s5
  $region1: #{two_layer_net.1} parent=0
    #allocation2 [shape = 'u8[28672]{0}', space=vmem, size = 0x7000, scoped, tag = 'input window, operand 0, single buffered']
    #allocation3 [shape = 's32[1]{0}', space=sflag, size = 0x4, scoped, tag = 'scoped memory for two_layer_net.1']
    #allocation4 [shape = 's32[1]{0}', space=sflag, size = 0x4, scoped, tag = 'scoped memory for two_layer_net.1']
    #allocation5 [shape = 'u8[200704]{0}', space=vmem, size = 0x31000, scoped, tag = 'input window, operand 1, single buffered']
    #allocation6 [shape = 's32[1]{0}', space=sflag, size = 0x4, scoped, tag = 'scoped memory for two_layer_net.1']
    #allocation7 [shape = 'u8[32768]{0}', space=vmem, size = 0x8000, scoped, tag = 'input window, operand 3, single buffered']
    #allocation8 [shape = 'u8[4096]{0}', space=vmem, size = 0x1000, scoped, tag = 'output window, operand 0, single buffered']
    %9 = vsyncpa [#allocation3], 0
    %10 = vsyncpa [#allocation6], 0
    %11 = vsyncpa [#allocation4], 0
    // Predicated region
    $region2: #{two_layer_net.1} parent=1 // pred_check
      _
    $region3: #{two_layer_net.1} parent=1 // pred_check_branch
      %13 = sbr.rel (0) target = $region5
    $region4: #{two_layer_net.1} parent=1 // pred_region
      %s15 = ssub.s32 896, 896
      %16 = vsyncadd [#allocation3], %s15
      %s18 = sshll.u32 [#allocation2], 4
      %s19 = int_to_ptr.vmem [resolvable:$true] %s18
      %21 = dma.hbm_to_vmem [thread:$0]  %s0, 896, %s19, [#allocation3]
    $region5: #{two_layer_net.1} parent=1 // pred_fallthru
      _
    // Predicated region
    $region6: #{two_layer_net.1} parent=1 // pred_check
      _
    $region7: #{two_layer_net.1} parent=1 // pred_check_branch
      %23 = sbr.rel (0) target = $region9
    $region8: #{two_layer_net.1} parent=1 // pred_region
      %s25 = ssub.s32 6272, 6272
      %26 = vsyncadd [#allocation6], %s25
      %s27 = sshll.u32 [#allocation5], 4
      %s28 = int_to_ptr.vmem [resolvable:$true] %s27
      %33 = dma.hbm_to_vmem [thread:$0]  %s1, 6272, %s28, [#allocation6], 64, 64, 4
    $region9: #{two_layer_net.1} parent=1 // pred_fallthru
      _
    // Predicated region
    $region10: #{two_layer_net.1} parent=1 // pred_check
      _
    $region11: #{two_layer_net.1} parent=1 // pred_check_branch
      %35 = sbr.rel (0) target = $region13
    $region12: #{two_layer_net.1} parent=1 // pred_region
      _
    $region13: #{two_layer_net.1} parent=1 // pred_fallthru
      _
    // Predicated region
    $region14: #{two_layer_net.1} parent=1 // pred_check
      _
    $region15: #{two_layer_net.1} parent=1 // pred_check_branch
      %37 = sbr.rel (0) target = $region17
    $region16: #{two_layer_net.1} parent=1 // pred_region
      %s39 = ssub.s32 1024, 1024
      %40 = vsyncadd [#allocation6], %s39
      %s41 = sshll.u32 [#allocation7], 4
      %s42 = int_to_ptr.vmem [resolvable:$true] %s41
      %47 = dma.hbm_to_vmem [thread:$0]  %s3, 1024, %s42, [#allocation6], 64, 64, 4
    $region17: #{two_layer_net.1} parent=1 // pred_fallthru
      _
    // Predicated region
    $region18: #{two_layer_net.1} parent=1 // pred_check
      _
    $region19: #{two_layer_net.1} parent=1 // pred_check_branch
      %49 = sbr.rel (0) target = $region21
    $region20: #{two_layer_net.1} parent=1 // pred_region
      %50 = dma.done [#allocation3], 896
    $region21: #{two_layer_net.1} parent=1 // pred_fallthru
      _
    // Predicated region
    $region22: #{two_layer_net.1} parent=1 // pred_check
      _
    $region23: #{two_layer_net.1} parent=1 // pred_check_branch
      %52 = sbr.rel (0) target = $region25
    $region24: #{two_layer_net.1} parent=1 // pred_region
      %53 = dma.done [#allocation6], 6272
    $region25: #{two_layer_net.1} parent=1 // pred_fallthru
      _
    // Predicated region
    $region26: #{two_layer_net.1} parent=1 // pred_check
      _
    $region27: #{two_layer_net.1} parent=1 // pred_check_branch
      %55 = sbr.rel (0) target = $region29
    $region28: #{two_layer_net.1} parent=1 // pred_region
      %56 = dma.done [#allocation6], 1024
    $region29: #{two_layer_net.1} parent=1 // pred_fallthru
      _
    %v58 = vld [vmem:[#allocation2] sm:$0xff]
    %v59 = vld [vmem:[#allocation2 + $0x8] sm:$0xff]
    %v60 = vld [vmem:[#allocation2 + $0x10] sm:$0xff]
    %v61 = vld [vmem:[#allocation2 + $0x18] sm:$0xff]
    %v62 = vld [vmem:[#allocation2 + $0x20] sm:$0xff]
    %v63 = vld [vmem:[#allocation2 + $0x28] sm:$0xff]
    %v64 = vld [vmem:[#allocation2 + $0x30] sm:$0xff]
    %v65 = vpack.c.bf16 %v58, %v58
    %v66 = vpack.c.bf16 %v59, %v59
    %v67 = vpack.c.bf16 %v60, %v60
    %v68 = vpack.c.bf16 %v61, %v61
    %v69 = vpack.c.bf16 %v62, %v62
    %v70 = vpack.c.bf16 %v63, %v63
    %v71 = vpack.c.bf16 %v64, %v64
    %v72 = vld [vmem:[%s2] sm:$0x3]
    %v73 = vld [vmem:[#allocation5] sm:$0xf]
    %v74 = vld [vmem:[#allocation5 + $0x4] sm:$0xf]
    %v75 = vld [vmem:[#allocation5 + $0x8] sm:$0xf]
    %v76 = vld [vmem:[#allocation5 + $0xc] sm:$0xf]
    %v77 = vld [vmem:[#allocation5 + $0x10] sm:$0xf]
    %v78 = vld [vmem:[#allocation5 + $0x14] sm:$0xf]
    %v79 = vld [vmem:[#allocation5 + $0x18] sm:$0xf]
    %v80 = vld [vmem:[#allocation5 + $0x1c] sm:$0xf]
    %v81 = vld [vmem:[#allocation5 + $0x20] sm:$0xf]
    %v82 = vld [vmem:[#allocation5 + $0x24] sm:$0xf]
    %v83 = vld [vmem:[#allocation5 + $0x28] sm:$0xf]
    %v84 = vld [vmem:[#allocation5 + $0x2c] sm:$0xf]
    %v85 = vld [vmem:[#allocation5 + $0x30] sm:$0xf]
    %v86 = vld [vmem:[#allocation5 + $0x34] sm:$0xf]
    %v87 = vld [vmem:[#allocation5 + $0x38] sm:$0xf]
    %v88 = vld [vmem:[#allocation5 + $0x3c] sm:$0xf]
    %v89 = vld [vmem:[#allocation5 + $0x40] sm:$0xf]
    %v90 = vld [vmem:[#allocation5 + $0x44] sm:$0xf]
    %v91 = vld [vmem:[#allocation5 + $0x48] sm:$0xf]
    %v92 = vld [vmem:[#allocation5 + $0x4c] sm:$0xf]
    %v93 = vld [vmem:[#allocation5 + $0x50] sm:$0xf]
    %v94 = vld [vmem:[#allocation5 + $0x54] sm:$0xf]
    %v95 = vld [vmem:[#allocation5 + $0x58] sm:$0xf]
    %v96 = vld [vmem:[#allocation5 + $0x5c] sm:$0xf]
    %v97 = vld [vmem:[#allocation5 + $0x60] sm:$0xf]
    %v98 = vld [vmem:[#allocation5 + $0x64] sm:$0xf]
    %v99 = vld [vmem:[#allocation5 + $0x68] sm:$0xf]
    %v100 = vld [vmem:[#allocation5 + $0x6c] sm:$0xf]
    %v101 = vld [vmem:[#allocation5 + $0x70] sm:$0xf]
    %v102 = vld [vmem:[#allocation5 + $0x74] sm:$0xf]
    %v103 = vld [vmem:[#allocation5 + $0x78] sm:$0xf]
    %v104 = vld [vmem:[#allocation5 + $0x7c] sm:$0xf]
    %v105 = vld [vmem:[#allocation5 + $0x80] sm:$0xf]
    %v106 = vld [vmem:[#allocation5 + $0x84] sm:$0xf]
    %v107 = vld [vmem:[#allocation5 + $0x88] sm:$0xf]
    %v108 = vld [vmem:[#allocation5 + $0x8c] sm:$0xf]
    %v109 = vld [vmem:[#allocation5 + $0x90] sm:$0xf]
    %v110 = vld [vmem:[#allocation5 + $0x94] sm:$0xf]
    %v111 = vld [vmem:[#allocation5 + $0x98] sm:$0xf]
    %v112 = vld [vmem:[#allocation5 + $0x9c] sm:$0xf]
    %v113 = vld [vmem:[#allocation5 + $0xa0] sm:$0xf]
    %v114 = vld [vmem:[#allocation5 + $0xa4] sm:$0xf]
    %v115 = vld [vmem:[#allocation5 + $0xa8] sm:$0xf]
    %v116 = vld [vmem:[#allocation5 + $0xac] sm:$0xf]
    %v117 = vld [vmem:[#allocation5 + $0xb0] sm:$0xf]
    %v118 = vld [vmem:[#allocation5 + $0xb4] sm:$0xf]
    %v119 = vld [vmem:[#allocation5 + $0xb8] sm:$0xf]
    %v120 = vld [vmem:[#allocation5 + $0xbc] sm:$0xf]
    %v121 = vld [vmem:[#allocation5 + $0xc0] sm:$0xf]
    %v122 = vld [vmem:[#allocation5 + $0xc4] sm:$0xf]
    %v123 = vld [vmem:[#allocation5 + $0xc8] sm:$0xf]
    %v124 = vld [vmem:[#allocation5 + $0xcc] sm:$0xf]
    %v125 = vld [vmem:[#allocation5 + $0xd0] sm:$0xf]
    %v126 = vld [vmem:[#allocation5 + $0xd4] sm:$0xf]
    %v127 = vld [vmem:[#allocation5 + $0xd8] sm:$0xf]
    %v128 = vld [vmem:[#allocation5 + $0xdc] sm:$0xf]
    %v129 = vld [vmem:[#allocation5 + $0xe0] sm:$0xf]
    %v130 = vld [vmem:[#allocation5 + $0xe4] sm:$0xf]
    %v131 = vld [vmem:[#allocation5 + $0xe8] sm:$0xf]
    %v132 = vld [vmem:[#allocation5 + $0xec] sm:$0xf]
    %v133 = vld [vmem:[#allocation5 + $0xf0] sm:$0xf]
    %v134 = vld [vmem:[#allocation5 + $0xf4] sm:$0xf]
    %v135 = vld [vmem:[#allocation5 + $0xf8] sm:$0xf]
    %v136 = vld [vmem:[#allocation5 + $0xfc] sm:$0xf]
    %v137 = vld [vmem:[#allocation5 + $0x100] sm:$0xf]
    %v138 = vld [vmem:[#allocation5 + $0x104] sm:$0xf]
    %v139 = vld [vmem:[#allocation5 + $0x108] sm:$0xf]
    %v140 = vld [vmem:[#allocation5 + $0x10c] sm:$0xf]
    %v141 = vld [vmem:[#allocation5 + $0x110] sm:$0xf]
    %v142 = vld [vmem:[#allocation5 + $0x114] sm:$0xf]
    %v143 = vld [vmem:[#allocation5 + $0x118] sm:$0xf]
    %v144 = vld [vmem:[#allocation5 + $0x11c] sm:$0xf]
    %v145 = vld [vmem:[#allocation5 + $0x120] sm:$0xf]
    %v146 = vld [vmem:[#allocation5 + $0x124] sm:$0xf]
    %v147 = vld [vmem:[#allocation5 + $0x128] sm:$0xf]
    %v148 = vld [vmem:[#allocation5 + $0x12c] sm:$0xf]
    %v149 = vld [vmem:[#allocation5 + $0x130] sm:$0xf]
    %v150 = vld [vmem:[#allocation5 + $0x134] sm:$0xf]
    %v151 = vld [vmem:[#allocation5 + $0x138] sm:$0xf]
    %v152 = vld [vmem:[#allocation5 + $0x13c] sm:$0xf]
    %v153 = vld [vmem:[#allocation5 + $0x140] sm:$0xf]
    %v154 = vld [vmem:[#allocation5 + $0x144] sm:$0xf]
    %v155 = vld [vmem:[#allocation5 + $0x148] sm:$0xf]
    %v156 = vld [vmem:[#allocation5 + $0x14c] sm:$0xf]
    %v157 = vld [vmem:[#allocation5 + $0x150] sm:$0xf]
    %v158 = vld [vmem:[#allocation5 + $0x154] sm:$0xf]
    %v159 = vld [vmem:[#allocation5 + $0x158] sm:$0xf]
    %v160 = vld [vmem:[#allocation5 + $0x15c] sm:$0xf]
    %v161 = vld [vmem:[#allocation5 + $0x160] sm:$0xf]
    %v162 = vld [vmem:[#allocation5 + $0x164] sm:$0xf]
    %v163 = vld [vmem:[#allocation5 + $0x168] sm:$0xf]
    %v164 = vld [vmem:[#allocation5 + $0x16c] sm:$0xf]
    %v165 = vld [vmem:[#allocation5 + $0x170] sm:$0xf]
    %v166 = vld [vmem:[#allocation5 + $0x174] sm:$0xf]
    %v167 = vld [vmem:[#allocation5 + $0x178] sm:$0xf]
    %v168 = vld [vmem:[#allocation5 + $0x17c] sm:$0xf]
    %v169 = vld [vmem:[#allocation5 + $0x180] sm:$0xf]
    %v170 = vld [vmem:[#allocation5 + $0x184] sm:$0xf]
    %v171 = vlaneseq
    %v172 = vshrl.u32 %v171, 7
    %v173 = vsub.s32 0, %v172
    %v174 = vrot.slane %v72, %v173
    %v273 = vunpack.c.l.b16 %v73
    %v274 = vunpack.c.l.b16 %v74
    %v275 = vunpack.c.l.b16 %v75
    %v276 = vunpack.c.l.b16 %v76
    %v277 = vunpack.c.l.b16 %v77
    %v278 = vunpack.c.l.b16 %v78
    %v279 = vunpack.c.l.b16 %v79
    %v280 = vunpack.c.l.b16 %v80
    %v281 = vunpack.c.l.b16 %v81
    %v282 = vunpack.c.l.b16 %v82
    %v283 = vunpack.c.l.b16 %v83
    %v284 = vunpack.c.l.b16 %v84
    %v285 = vunpack.c.l.b16 %v85
    %v286 = vunpack.c.l.b16 %v86
    %v287 = vunpack.c.l.b16 %v87
    %v288 = vunpack.c.l.b16 %v88
    %v289 = vunpack.c.l.b16 %v89
    %v290 = vunpack.c.l.b16 %v90
    %v291 = vunpack.c.l.b16 %v91
    %v292 = vunpack.c.l.b16 %v92
    %v293 = vunpack.c.l.b16 %v93
    %v294 = vunpack.c.l.b16 %v94
    %v295 = vunpack.c.l.b16 %v95
    %v296 = vunpack.c.l.b16 %v96
    %v297 = vunpack.c.l.b16 %v97
    %v298 = vunpack.c.l.b16 %v98
    %v299 = vunpack.c.l.b16 %v99
    %v300 = vunpack.c.l.b16 %v100
    %v301 = vunpack.c.l.b16 %v101
    %v302 = vunpack.c.l.b16 %v102
    %v303 = vunpack.c.l.b16 %v103
    %v304 = vunpack.c.l.b16 %v104
    %v305 = vunpack.c.l.b16 %v105
    %v306 = vunpack.c.l.b16 %v106
    %v307 = vunpack.c.l.b16 %v107
    %v308 = vunpack.c.l.b16 %v108
    %v309 = vunpack.c.l.b16 %v109
    %v310 = vunpack.c.l.b16 %v110
    %v311 = vunpack.c.l.b16 %v111
    %v312 = vunpack.c.l.b16 %v112
    %v313 = vunpack.c.l.b16 %v113
    %v314 = vunpack.c.l.b16 %v114
    %v315 = vunpack.c.l.b16 %v115
    %v316 = vunpack.c.l.b16 %v116
    %v317 = vunpack.c.l.b16 %v117
    %v318 = vunpack.c.l.b16 %v118
    %v319 = vunpack.c.l.b16 %v119
    %v320 = vunpack.c.l.b16 %v120
    %v321 = vunpack.c.l.b16 %v121
    %v322 = vunpack.c.l.b16 %v122
    %v323 = vunpack.c.l.b16 %v123
    %v324 = vunpack.c.l.b16 %v124
    %v325 = vunpack.c.l.b16 %v125
    %v326 = vunpack.c.l.b16 %v126
    %v327 = vunpack.c.l.b16 %v127
    %v328 = vunpack.c.l.b16 %v128
    %v329 = vunpack.c.l.b16 %v129
    %v330 = vunpack.c.l.b16 %v130
    %v331 = vunpack.c.l.b16 %v131
    %v332 = vunpack.c.l.b16 %v132
    %v333 = vunpack.c.l.b16 %v133
    %v334 = vunpack.c.l.b16 %v134
    %v335 = vunpack.c.l.b16 %v135
    %v336 = vunpack.c.l.b16 %v136
    %v337 = vunpack.c.l.b16 %v137
    %v338 = vunpack.c.l.b16 %v138
    %v339 = vunpack.c.l.b16 %v139
    %v340 = vunpack.c.l.b16 %v140
    %v341 = vunpack.c.l.b16 %v141
    %v342 = vunpack.c.l.b16 %v142
    %v343 = vunpack.c.l.b16 %v143
    %v344 = vunpack.c.l.b16 %v144
    %v345 = vunpack.c.l.b16 %v145
    %v346 = vunpack.c.l.b16 %v146
    %v347 = vunpack.c.l.b16 %v147
    %v348 = vunpack.c.l.b16 %v148
    %v349 = vunpack.c.l.b16 %v149
    %v350 = vunpack.c.l.b16 %v150
    %v351 = vunpack.c.l.b16 %v151
    %v352 = vunpack.c.l.b16 %v152
    %v353 = vunpack.c.l.b16 %v153
    %v354 = vunpack.c.l.b16 %v154
    %v355 = vunpack.c.l.b16 %v155
    %v356 = vunpack.c.l.b16 %v156
    %v357 = vunpack.c.l.b16 %v157
    %v358 = vunpack.c.l.b16 %v158
    %v359 = vunpack.c.l.b16 %v159
    %v360 = vunpack.c.l.b16 %v160
    %v361 = vunpack.c.l.b16 %v161
    %v362 = vunpack.c.l.b16 %v162
    %v363 = vunpack.c.l.b16 %v163
    %v364 = vunpack.c.l.b16 %v164
    %v365 = vunpack.c.l.b16 %v165
    %v366 = vunpack.c.l.b16 %v166
    %v367 = vunpack.c.l.b16 %v167
    %v368 = vunpack.c.l.b16 %v168
    %v369 = vunpack.c.l.b16 %v169
    %v370 = vunpack.c.l.b16 %v170
    %v371 = vpack.c.b16 %v274, %v273
    %v372 = vpack.c.b16 %v276, %v275
    %v373 = vpack.c.b16 %v278, %v277
    %v374 = vpack.c.b16 %v280, %v279
    %v375 = vpack.c.b16 %v282, %v281
    %v376 = vpack.c.b16 %v284, %v283
    %v377 = vpack.c.b16 %v286, %v285
    %v378 = vpack.c.b16 %v288, %v287
    %v379 = vpack.c.b16 %v290, %v289
    %v380 = vpack.c.b16 %v292, %v291
    %v381 = vpack.c.b16 %v294, %v293
    %v382 = vpack.c.b16 %v296, %v295
    %v383 = vpack.c.b16 %v298, %v297
    %v384 = vpack.c.b16 %v300, %v299
    %v385 = vpack.c.b16 %v302, %v301
    %v386 = vpack.c.b16 %v304, %v303
    %v387 = vpack.c.b16 %v306, %v305
    %v388 = vpack.c.b16 %v308, %v307
    %v389 = vpack.c.b16 %v310, %v309
    %v390 = vpack.c.b16 %v312, %v311
    %v391 = vpack.c.b16 %v314, %v313
    %v392 = vpack.c.b16 %v316, %v315
    %v393 = vpack.c.b16 %v318, %v317
    %v394 = vpack.c.b16 %v320, %v319
    %v395 = vpack.c.b16 %v322, %v321
    %v396 = vpack.c.b16 %v324, %v323
    %v397 = vpack.c.b16 %v326, %v325
    %v398 = vpack.c.b16 %v328, %v327
    %v399 = vpack.c.b16 %v330, %v329
    %v400 = vpack.c.b16 %v332, %v331
    %v401 = vpack.c.b16 %v334, %v333
    %v402 = vpack.c.b16 %v336, %v335
    %v403 = vpack.c.b16 %v338, %v337
    %v404 = vpack.c.b16 %v340, %v339
    %v405 = vpack.c.b16 %v342, %v341
    %v406 = vpack.c.b16 %v344, %v343
    %v407 = vpack.c.b16 %v346, %v345
    %v408 = vpack.c.b16 %v348, %v347
    %v409 = vpack.c.b16 %v350, %v349
    %v410 = vpack.c.b16 %v352, %v351
    %v411 = vpack.c.b16 %v354, %v353
    %v412 = vpack.c.b16 %v356, %v355
    %v413 = vpack.c.b16 %v358, %v357
    %v414 = vpack.c.b16 %v360, %v359
    %v415 = vpack.c.b16 %v362, %v361
    %v416 = vpack.c.b16 %v364, %v363
    %v417 = vpack.c.b16 %v366, %v365
    %v418 = vpack.c.b16 %v368, %v367
    %v419 = vpack.c.b16 %v370, %v369
    %vm469 = vcmask 130048
    %v471 = vsel %vm469, %v71, 0
    %473 = vmatprep.subr.bf16.mxu0 0
    %474 = vmatpush1.bf16.msra.mxu0 %v371
    %475 = vmatprep.subr.bf16.mxu0 0
    %476 = vmatpush1.bf16.msra.mxu0 %v372
    %477 = vmatprep.subr.bf16.mxu0 0
    %478 = vmatpush1.bf16.msra.mxu0 %v373
    %479 = vmatprep.subr.bf16.mxu0 0
    %480 = vmatpush1.bf16.msra.mxu0 %v374
    %481 = vmatprep.subr.bf16.mxu0 0
    %482 = vmatpush1.bf16.msra.mxu0 %v375
    %483 = vmatprep.subr.bf16.mxu0 0
    %484 = vmatpush1.bf16.msra.mxu0 %v376
    %485 = vmatprep.subr.bf16.mxu0 0
    %486 = vmatpush1.bf16.msra.mxu0 %v377
    %487 = vmatprep.subr.bf16.mxu0 0
    %488 = vmatpush1.bf16.msra.mxu0 %v378
    %489 = vmatprep.subr.bf16.mxu0 0
    %490 = vmatpush1.bf16.msra.mxu0 %v379
    %491 = vmatprep.subr.bf16.mxu0 0
    %492 = vmatpush1.bf16.msra.mxu0 %v380
    %493 = vmatprep.subr.bf16.mxu0 0
    %494 = vmatpush1.bf16.msra.mxu0 %v381
    %495 = vmatprep.subr.bf16.mxu0 0
    %496 = vmatpush1.bf16.msra.mxu0 %v382
    %497 = vmatprep.subr.bf16.mxu0 0
    %498 = vmatpush1.bf16.msra.mxu0 %v383
    %499 = vmatprep.subr.bf16.mxu0 0
    %500 = vmatpush1.bf16.msra.mxu0 %v384
    %501 = vmatprep.subr.bf16.mxu0 0
    %502 = vmatpush1.bf16.msra.mxu0 %v385
    %503 = vmatprep.subr.bf16.mxu0 0
    %504 = vmatpush1.bf16.msra.mxu0 %v386
    %505 = vmatprep.mubr.bf16.mxu0 %v66
    %506 = vmatmul.mubr.bf16.gmra.mrb[0].mxu0 %v65
    %v507 = vpop.f32.mrb[0].mxu0
    %v508 = vadd.f32 %v174, %v507
    %v509 = vpop.f32.mrb[0].mxu0
    %v510 = vpop.f32.mrb[0].mxu0
    %v511 = vpop.f32.mrb[0].mxu0
    %512 = vdwg.mxu0
    %513 = vmatprep.subr.bf16.mxu0 0
    %514 = vmatpush1.bf16.msra.mxu0 %v387
    %515 = vmatprep.subr.bf16.mxu0 0
    %516 = vmatpush1.bf16.msra.mxu0 %v388
    %517 = vmatprep.subr.bf16.mxu0 0
    %518 = vmatpush1.bf16.msra.mxu0 %v389
    %519 = vmatprep.subr.bf16.mxu0 0
    %520 = vmatpush1.bf16.msra.mxu0 %v390
    %521 = vmatprep.subr.bf16.mxu0 0
    %522 = vmatpush1.bf16.msra.mxu0 %v391
    %523 = vmatprep.subr.bf16.mxu0 0
    %524 = vmatpush1.bf16.msra.mxu0 %v392
    %525 = vmatprep.subr.bf16.mxu0 0
    %526 = vmatpush1.bf16.msra.mxu0 %v393
    %527 = vmatprep.subr.bf16.mxu0 0
    %528 = vmatpush1.bf16.msra.mxu0 %v394
    %529 = vmatprep.subr.bf16.mxu0 0
    %530 = vmatpush1.bf16.msra.mxu0 %v395
    %531 = vmatprep.subr.bf16.mxu0 0
    %532 = vmatpush1.bf16.msra.mxu0 %v396
    %533 = vmatprep.subr.bf16.mxu0 0
    %534 = vmatpush1.bf16.msra.mxu0 %v397
    %535 = vmatprep.subr.bf16.mxu0 0
    %536 = vmatpush1.bf16.msra.mxu0 %v398
    %537 = vmatprep.subr.bf16.mxu0 0
    %538 = vmatpush1.bf16.msra.mxu0 %v399
    %539 = vmatprep.subr.bf16.mxu0 0
    %540 = vmatpush1.bf16.msra.mxu0 %v400
    %541 = vmatprep.subr.bf16.mxu0 0
    %542 = vmatpush1.bf16.msra.mxu0 %v401
    %543 = vmatprep.subr.bf16.mxu0 0
    %544 = vmatpush1.bf16.msra.mxu0 %v402
    %545 = vmatprep.mubr.bf16.mxu0 %v68
    %546 = vmatmul.mubr.bf16.gmra.mrb[0].mxu0 %v67
    %v547 = vpop.f32.mrb[0].mxu0
    %v548 = vadd.f32 %v508, %v547
    %v549 = vpop.f32.mrb[0].mxu0
    %v550 = vpop.f32.mrb[0].mxu0
    %v551 = vpop.f32.mrb[0].mxu0
    %552 = vdwg.mxu0
    %553 = vmatprep.subr.bf16.mxu0 0
    %554 = vmatpush1.bf16.msra.mxu0 %v403
    %555 = vmatprep.subr.bf16.mxu0 0
    %556 = vmatpush1.bf16.msra.mxu0 %v404
    %557 = vmatprep.subr.bf16.mxu0 0
    %558 = vmatpush1.bf16.msra.mxu0 %v405
    %559 = vmatprep.subr.bf16.mxu0 0
    %560 = vmatpush1.bf16.msra.mxu0 %v406
    %561 = vmatprep.subr.bf16.mxu0 0
    %562 = vmatpush1.bf16.msra.mxu0 %v407
    %563 = vmatprep.subr.bf16.mxu0 0
    %564 = vmatpush1.bf16.msra.mxu0 %v408
    %565 = vmatprep.subr.bf16.mxu0 0
    %566 = vmatpush1.bf16.msra.mxu0 %v409
    %567 = vmatprep.subr.bf16.mxu0 0
    %568 = vmatpush1.bf16.msra.mxu0 %v410
    %569 = vmatprep.subr.bf16.mxu0 0
    %570 = vmatpush1.bf16.msra.mxu0 %v411
    %571 = vmatprep.subr.bf16.mxu0 0
    %572 = vmatpush1.bf16.msra.mxu0 %v412
    %573 = vmatprep.subr.bf16.mxu0 0
    %574 = vmatpush1.bf16.msra.mxu0 %v413
    %575 = vmatprep.subr.bf16.mxu0 0
    %576 = vmatpush1.bf16.msra.mxu0 %v414
    %577 = vmatprep.subr.bf16.mxu0 0
    %578 = vmatpush1.bf16.msra.mxu0 %v415
    %579 = vmatprep.subr.bf16.mxu0 0
    %580 = vmatpush1.bf16.msra.mxu0 %v416
    %581 = vmatprep.subr.bf16.mxu0 0
    %582 = vmatpush1.bf16.msra.mxu0 %v417
    %583 = vmatprep.subr.bf16.mxu0 0
    %584 = vmatpush1.bf16.msra.mxu0 %v418
    %585 = vmatprep.mubr.bf16.mxu0 %v70
    %586 = vmatmul.mubr.bf16.gmra.mrb[0].mxu0 %v69
    %v587 = vpop.f32.mrb[0].mxu0
    %v588 = vadd.f32 %v548, %v587
    %v589 = vpop.f32.mrb[0].mxu0
    %v590 = vpop.f32.mrb[0].mxu0
    %v591 = vpop.f32.mrb[0].mxu0
    %592 = vdwg.mxu0
    %593 = vmatprep.subr.bf16.mxu0 0
    %594 = vmatpush1.bf16.msra.mxu0 %v419
    %595 = vmatprep.subr.bf16.mxu0 0
    %596 = vmatpush1.bf16.msra.mxu0 0
    %597 = vmatprep.subr.bf16.mxu0 0
    %598 = vmatpush1.bf16.msra.mxu0 0
    %599 = vmatprep.subr.bf16.mxu0 0
    %600 = vmatpush1.bf16.msra.mxu0 0
    %601 = vmatprep.subr.bf16.mxu0 0
    %602 = vmatpush1.bf16.msra.mxu0 0
    %603 = vmatprep.subr.bf16.mxu0 0
    %604 = vmatpush1.bf16.msra.mxu0 0
    %605 = vmatprep.subr.bf16.mxu0 0
    %606 = vmatpush1.bf16.msra.mxu0 0
    %607 = vmatprep.subr.bf16.mxu0 0
    %608 = vmatpush1.bf16.msra.mxu0 0
    %609 = vmatprep.subr.bf16.mxu0 0
    %610 = vmatpush1.bf16.msra.mxu0 0
    %611 = vmatprep.subr.bf16.mxu0 0
    %612 = vmatpush1.bf16.msra.mxu0 0
    %613 = vmatprep.subr.bf16.mxu0 0
    %614 = vmatpush1.bf16.msra.mxu0 0
    %615 = vmatprep.subr.bf16.mxu0 0
    %616 = vmatpush1.bf16.msra.mxu0 0
    %617 = vmatprep.subr.bf16.mxu0 0
    %618 = vmatpush1.bf16.msra.mxu0 0
    %619 = vmatprep.subr.bf16.mxu0 0
    %620 = vmatpush1.bf16.msra.mxu0 0
    %621 = vmatprep.subr.bf16.mxu0 0
    %622 = vmatpush1.bf16.msra.mxu0 0
    %623 = vmatprep.subr.bf16.mxu0 0
    %624 = vmatpush1.bf16.msra.mxu0 0
    %625 = vmatprep.mubr.bf16.mxu0 0
    %626 = vmatmul.mubr.bf16.gmra.mrb[0].mxu0 %v471
    %v627 = vpop.f32.mrb[0].mxu0
    %v628 = vadd.f32 %v588, %v627
    %v629 = vpop.f32.mrb[0].mxu0
    %v630 = vpop.f32.mrb[0].mxu0
    %v631 = vpop.f32.mrb[0].mxu0
    %632 = vdwg.mxu0
    %v633 = vmax.f32 %v628, 0.0
    %v634 = vsub.f32 0.0, %v633
    %v635 = vmul.f32 %v634, 1.442695
    %v636 = vpow.pop %v635
    %v637 = vadd.f32 %v636, 1.0
    %v638 = vrcp.pop %v637
    %v639 = vmul.f32 1.0, %v638
    %v640 = vpack.c.bf16 %v639, %v639
    %v641 = vld [vmem:[#allocation7] sm:$0xf]
    %v642 = vld [vmem:[#allocation7 + $0x4] sm:$0xf]
    %v643 = vld [vmem:[#allocation7 + $0x8] sm:$0xf]
    %v644 = vld [vmem:[#allocation7 + $0xc] sm:$0xf]
    %v645 = vld [vmem:[#allocation7 + $0x10] sm:$0xf]
    %v646 = vld [vmem:[#allocation7 + $0x14] sm:$0xf]
    %v647 = vld [vmem:[#allocation7 + $0x18] sm:$0xf]
    %v648 = vld [vmem:[#allocation7 + $0x1c] sm:$0xf]
    %v649 = vld [vmem:[#allocation7 + $0x20] sm:$0xf]
    %v650 = vld [vmem:[#allocation7 + $0x24] sm:$0xf]
    %v651 = vld [vmem:[#allocation7 + $0x28] sm:$0xf]
    %v652 = vld [vmem:[#allocation7 + $0x2c] sm:$0xf]
    %v653 = vld [vmem:[#allocation7 + $0x30] sm:$0xf]
    %v654 = vld [vmem:[#allocation7 + $0x34] sm:$0xf]
    %v655 = vld [vmem:[#allocation7 + $0x38] sm:$0xf]
    %v656 = vld [vmem:[#allocation7 + $0x3c] sm:$0xf]
    %v657 = vlaneseq
    %v658 = vshrl.u32 %v657, 7
    %v659 = vsub.s32 1, %v658
    %v660 = vrot.slane %v72, %v659
    %v677 = vunpack.c.l.b16 %v641
    %v678 = vunpack.c.l.b16 %v642
    %v679 = vunpack.c.l.b16 %v643
    %v680 = vunpack.c.l.b16 %v644
    %v681 = vunpack.c.l.b16 %v645
    %v682 = vunpack.c.l.b16 %v646
    %v683 = vunpack.c.l.b16 %v647
    %v684 = vunpack.c.l.b16 %v648
    %v685 = vunpack.c.l.b16 %v649
    %v686 = vunpack.c.l.b16 %v650
    %v687 = vunpack.c.l.b16 %v651
    %v688 = vunpack.c.l.b16 %v652
    %v689 = vunpack.c.l.b16 %v653
    %v690 = vunpack.c.l.b16 %v654
    %v691 = vunpack.c.l.b16 %v655
    %v692 = vunpack.c.l.b16 %v656
    %v693 = vpack.c.b16 %v678, %v677
    %v694 = vpack.c.b16 %v680, %v679
    %v695 = vpack.c.b16 %v682, %v681
    %v696 = vpack.c.b16 %v684, %v683
    %v697 = vpack.c.b16 %v686, %v685
    %v698 = vpack.c.b16 %v688, %v687
    %v699 = vpack.c.b16 %v690, %v689
    %v700 = vpack.c.b16 %v692, %v691
    %709 = vmatprep.subr.bf16.mxu0 0
    %710 = vmatpush1.bf16.msra.mxu0 %v693
    %711 = vmatprep.subr.bf16.mxu0 0
    %712 = vmatpush1.bf16.msra.mxu0 %v694
    %713 = vmatprep.subr.bf16.mxu0 0
    %714 = vmatpush1.bf16.msra.mxu0 %v695
    %715 = vmatprep.subr.bf16.mxu0 0
    %716 = vmatpush1.bf16.msra.mxu0 %v696
    %717 = vmatprep.subr.bf16.mxu0 0
    %718 = vmatpush1.bf16.msra.mxu0 %v697
    %719 = vmatprep.subr.bf16.mxu0 0
    %720 = vmatpush1.bf16.msra.mxu0 %v698
    %721 = vmatprep.subr.bf16.mxu0 0
    %722 = vmatpush1.bf16.msra.mxu0 %v699
    %723 = vmatprep.subr.bf16.mxu0 0
    %724 = vmatpush1.bf16.msra.mxu0 %v700
    %725 = vmatprep.subr.bf16.mxu0 0
    %726 = vmatpush1.bf16.msra.mxu0 0
    %727 = vmatprep.subr.bf16.mxu0 0
    %728 = vmatpush1.bf16.msra.mxu0 0
    %729 = vmatprep.subr.bf16.mxu0 0
    %730 = vmatpush1.bf16.msra.mxu0 0
    %731 = vmatprep.subr.bf16.mxu0 0
    %732 = vmatpush1.bf16.msra.mxu0 0
    %733 = vmatprep.subr.bf16.mxu0 0
    %734 = vmatpush1.bf16.msra.mxu0 0
    %735 = vmatprep.subr.bf16.mxu0 0
    %736 = vmatpush1.bf16.msra.mxu0 0
    %737 = vmatprep.subr.bf16.mxu0 0
    %738 = vmatpush1.bf16.msra.mxu0 0
    %739 = vmatprep.subr.bf16.mxu0 0
    %740 = vmatpush1.bf16.msra.mxu0 0
    %741 = vmatprep.mubr.bf16.mxu0 0
    %742 = vmatmul.mubr.bf16.gmra.mrb[0].mxu0 %v640
    %v743 = vpop.f32.mrb[0].mxu0
    %v744 = vadd.f32 %v660, %v743
    %v745 = vpop.f32.mrb[0].mxu0
    %v746 = vpop.f32.mrb[0].mxu0
    %v747 = vpop.f32.mrb[0].mxu0
    %748 = vdwg.mxu0
    %v749 = vmax.f32 %v744, 0.0
    %v750 = vrot.slane %v749, 4
    %v751 = vmax.f32 %v749, %v750
    %v752 = vrot.slane %v751, 2
    %v753 = vmax.f32 %v751, %v752
    %v754 = vrot.slane %v753, 1
    %v755 = vmax.f32 %v753, %v754
    %v756 = vsub.f32 %v749, %v755
    %v757 = vmul.f32 %v756, 1.442695
    %v758 = vpow.pop %v757
    %v759 = vrot.slane %v758, 4
    %v760 = vadd.f32 %v758, %v759
    %v761 = vrot.slane %v760, 2
    %v762 = vadd.f32 %v760, %v761
    %v763 = vrot.slane %v762, 1
    %v764 = vadd.f32 %v762, %v763
    %v765 = vrcp.pop %v764
    %v766 = vmul.f32 %v758, %v765
    %767 = vst [vmem:[#allocation8] sm:$0xff] %v766
    // Predicated region
    $region30: #{two_layer_net.1} parent=1 // pred_check
      _
    $region31: #{two_layer_net.1} parent=1 // pred_check_branch
      %769 = sbr.rel (0) target = $region33
    $region32: #{two_layer_net.1} parent=1 // pred_region
      %s771 = ssub.s32 128, 128
      %772 = vsyncadd [#allocation4], %s771
      %s774 = sshll.u32 [#allocation8], 4
      %s775 = int_to_ptr.vmem [resolvable:$true] %s774
      %777 = dma.vmem_to_hbm [thread:$0]  %s775, 128, %s4, [#allocation4]
    $region33: #{two_layer_net.1} parent=1 // pred_fallthru
      _
    // Predicated region
    $region34: #{two_layer_net.1} parent=1 // pred_check
      _
    $region35: #{two_layer_net.1} parent=1 // pred_check_branch
      %779 = sbr.rel (0) target = $region37
    $region36: #{two_layer_net.1} parent=1 // pred_region
      %780 = dma.done [#allocation4], 128
    $region37: #{two_layer_net.1} parent=1 // pred_fallthru
      _
    %781 = vsyncpa [#allocation3], 1
    %782 = vsyncpa [#allocation6], 1
    %783 = vsyncpa [#allocation4], 1

</llo_original>
